<compile_context>
chip_gen: v5e
topology: v5e:2x2
jax: 0.10.0
libtpu: 0.0.40
codegen_flags: <defaults>
</compile_context>

<pallas_src>
import functools

import jax
import jax.numpy as jnp
from jax.experimental import pallas as pl
from jax.experimental.pallas import tpu as pltpu


def ca_kernel(x_ref, wc_ref, bc_ref, o_ref, *, inv_hw):
    # x block: (Nb, C, HWp) in native dtype.
    x = x_ref[...]

    # AdaptiveAvgPool2d(1): f32-accumulated sum over the (zero-padded) lane
    # axis, divided by the TRUE number of spatial positions.
    s = jnp.sum(x.astype(jnp.float32), axis=-1)                  # (Nb, C)
    mean = s * inv_hw                                            # (Nb, C) f32

    # Fused 1x1 convs (Wc = W2 @ W1, bc = W2 @ b1 + b2), computed as a
    # VPU broadcast-mul + small lane reduce -- keeps the degenerate GEMV
    # off the MXU.  y2[n, c] = sum_k Wc[c, k] * mean[n, k] + bc[c]
    y2 = jnp.sum(wc_ref[...][None, :, :] * mean[:, None, :], axis=-1) \
         + bc_ref[...]                                           # (Nb, C) f32
    att = jax.nn.sigmoid(y2).astype(x.dtype)                     # (Nb, C)

    # Broadcast-multiply over the lane (spatial) axis in native dtype.
    o_ref[...] = x * att[:, :, None]


def ca_layer(x_nchw, w1, b1, w2, b2):
    N, C, H, W = x_nchw.shape
    HW = H * W
    # Lane-dense spatial axis: pad HW up to a multiple of 128 (zeros, so the
    # pooled sum is unaffected; the mean divides by the true HW).
    HWp = ((HW + 127) // 128) * 128
    x = x_nchw.reshape(N, C, HW)
    if HWp != HW:
        x = jnp.pad(x, ((0, 0), (0, 0), (0, HWp - HW)))

    # Fold the two 1x1 convs (valid: no activation between them in this module):
    #   y = W2 (W1 m + b1) + b2 = (W2 @ W1) m + (W2 @ b1 + b2)
    wc = (w2.astype(jnp.float32) @ w1.astype(jnp.float32))                       # (C, C)
    bc = (w2.astype(jnp.float32) @ b1.astype(jnp.float32)
          + b2.astype(jnp.float32)).reshape(1, C)                               # (1, C)

    itemsize = jnp.dtype(x_nchw.dtype).itemsize

    # Pick the biggest batch-block that fits a conservative VMEM budget
    # (in + out blocks, double-buffered), sized for v7x's 64 MiB VMEM, but
    # keep >= 2 grid steps when N >= 2 so both v7x TensorCores get work.
    vmem_budget = 48 * 1024 * 1024
    per_img_io = 2 * C * HWp * itemsize                  # in + out, one image
    nb = max(1, int(vmem_budget // max(1, 2 * per_img_io)))   # x2: double-buffered
    nb = min(nb, N)
    if N >= 2:
        nb = min(nb, N // 2)
    while N % nb:
        nb -= 1
    grid = (N // nb,)

    block_bytes = nb * C * HWp * itemsize
    needed = 4 * block_bytes + wc.size * 4 + bc.size * 4 + (2 << 20)
    vmem_limit = int(min(64 * 1024 * 1024, max(32 * 1024 * 1024, needed)))

    kernel = functools.partial(ca_kernel, inv_hw=1.0 / HW)

    out = pl.pallas_call(
        kernel,
        out_shape=jax.ShapeDtypeStruct((N, C, HWp), x_nchw.dtype),
        grid_spec=pltpu.PrefetchScalarGridSpec(
            num_scalar_prefetch=0,
            grid=grid,
            in_specs=[
                pl.BlockSpec((nb, C, HWp), lambda n: (n, 0, 0)),
                pl.BlockSpec((C, C), lambda n: (0, 0)),   # fused weight, resident
                pl.BlockSpec((1, C), lambda n: (0, 0)),   # fused bias, resident
            ],
            out_specs=pl.BlockSpec((nb, C, HWp), lambda n: (n, 0, 0)),
        ),
        compiler_params=pltpu.CompilerParams(
            dimension_semantics=("parallel",),
            vmem_limit_bytes=vmem_limit),
    )(x, wc, bc)

    if HWp != HW:
        out = out[:, :, :HW]
    return out.reshape(N, C, H, W)


def ca_layer_ref(x, w1, b1, w2, b2):
    # Pure-JAX reference (matches PyTorch CALayer.forward: pool->conv->conv->sigmoid).
    mean = jnp.mean(x.astype(jnp.float32), axis=(2, 3))            # (N, C)
    y1 = mean @ w1.T + b1                                          # (N, Cr)
    y2 = y1 @ w2.T + b2                                            # (N, C)
    att = jax.nn.sigmoid(y2)[:, :, None, None]                     # (N, C, 1, 1)
    return (x * att.astype(x.dtype)).astype(x.dtype)


if __name__ == "__main__":
    # Small shapes consistent with the module: in_channels = out_channels = 8, reduction = 4
    N, C, H, W = 2, 8, 16, 16
    reduction = 4
    Cr = C // reduction

    key = jax.random.PRNGKey(0)
    kx, k1, k2, k3, k4 = jax.random.split(key, 5)

    x = jax.random.normal(kx, (N, C, H, W), dtype=jnp.float32)

    # Conv2d 1x1 weights are (out, in) matrices here.
    w1 = jax.random.normal(k1, (Cr, C), dtype=jnp.float32) * 0.3
    b1 = jax.random.normal(k2, (Cr,), dtype=jnp.float32) * 0.1
    w2 = jax.random.normal(k3, (C, Cr), dtype=jnp.float32) * 0.3
    b2 = jax.random.normal(k4, (C,), dtype=jnp.float32) * 0.1

    out = jax.block_until_ready(ca_layer(x, w1, b1, w2, b2))
    ref = ca_layer_ref(x, w1, b1, w2, b2)

    assert out.shape == (N, C, H, W)
    assert jnp.allclose(out, ref, atol=1e-5, rtol=1e-5), "mismatch vs reference"
    print("KERNEL_OK")
</pallas_src>

<mosaic_0001>
module attributes {stable_mosaic.version = 11 : i64} {
  func.func @ca_kernel(%arg0: i32, %arg1: memref<1x8x256xf32, #tpu.memory_space<vmem>>, %arg2: memref<8x8xf32, #tpu.memory_space<vmem>>, %arg3: memref<1x8xf32, #tpu.memory_space<vmem>>, %arg4: memref<1x8x256xf32, #tpu.memory_space<vmem>>) attributes {dimension_semantics = [#tpu.dimension_semantics<parallel>], iteration_bounds = array<i64: 2>, scalar_prefetch = 0 : i64, scratch_operands = 0 : i64, tpu.core_type = #tpu.core_type<tc>, window_params = [{transform_indices = @transform_0, window_bounds = array<i64: 1, 8, 256>}, {pipeline_mode = #tpu.pipeline_mode<synchronous>, transform_indices = @transform_1, window_bounds = array<i64: 8, 8>}, {pipeline_mode = #tpu.pipeline_mode<synchronous>, transform_indices = @transform_2, window_bounds = array<i64: 1, 8>}, {transform_indices = @transform_3, window_bounds = array<i64: 1, 8, 256>}]} {
    %c0 = arith.constant 0 : index
    %c0_0 = arith.constant 0 : index
    %c0_1 = arith.constant 0 : index
    %0 = vector.load %arg1[%c0, %c0_0, %c0_1] : memref<1x8x256xf32, #tpu.memory_space<vmem>>, vector<1x8x256xf32>
    %cst = arith.constant dense<0.000000e+00> : vector<1x8xf32>
    %1 = vector.multi_reduction <add>, %0, %cst [2] : vector<1x8x256xf32> to vector<1x8xf32>
    %cst_2 = arith.constant 3.906250e-03 : f32
    %2 = vector.broadcast %cst_2 : f32 to vector<1x8xf32>
    %3 = arith.mulf %1, %2 : vector<1x8xf32>
    %c0_3 = arith.constant 0 : index
    %c0_4 = arith.constant 0 : index
    %4 = vector.load %arg2[%c0_3, %c0_4] : memref<8x8xf32, #tpu.memory_space<vmem>>, vector<8x8xf32>
    %5 = vector.shape_cast %4 : vector<8x8xf32> to vector<1x8x8xf32>
    %6 = vector.shape_cast %3 : vector<1x8xf32> to vector<1x1x8xf32>
    %7 = vector.broadcast %6 : vector<1x1x8xf32> to vector<1x8x8xf32>
    %8 = arith.mulf %5, %7 : vector<1x8x8xf32>
    %cst_5 = arith.constant dense<0.000000e+00> : vector<1x8xf32>
    %9 = vector.multi_reduction <add>, %8, %cst_5 [2] : vector<1x8x8xf32> to vector<1x8xf32>
    %c0_6 = arith.constant 0 : index
    %c0_7 = arith.constant 0 : index
    %10 = vector.load %arg3[%c0_6, %c0_7] : memref<1x8xf32, #tpu.memory_space<vmem>>, vector<1x8xf32>
    %11 = arith.addf %9, %10 : vector<1x8xf32>
    %12 = arith.negf %11 : vector<1x8xf32>
    %13 = math.exp %12 : vector<1x8xf32>
    %cst_8 = arith.constant 1.000000e+00 : f32
    %14 = vector.broadcast %cst_8 : f32 to vector<1x8xf32>
    %15 = arith.addf %14, %13 : vector<1x8xf32>
    %16 = arith.divf %14, %15 : vector<1x8xf32>
    %17 = vector.shape_cast %16 : vector<1x8xf32> to vector<1x8x1xf32>
    %18 = vector.broadcast %17 : vector<1x8x1xf32> to vector<1x8x256xf32>
    %19 = arith.mulf %0, %18 : vector<1x8x256xf32>
    %c0_9 = arith.constant 0 : index
    %c0_10 = arith.constant 0 : index
    %c0_11 = arith.constant 0 : index
    %20 = vector.load %arg4[%c0_9, %c0_10, %c0_11] : memref<1x8x256xf32, #tpu.memory_space<vmem>>, vector<1x8x256xf32>
    tpu.vector_store %arg4[%c0_9, %c0_10, %c0_11], %19 {strides = array<i32>} : memref<1x8x256xf32, #tpu.memory_space<vmem>>, vector<1x8x256xf32>,
    return
  }
  func.func @transform_0(%arg0: i32) -> (i32, i32, i32) {
    %c0_i32 = arith.constant 0 : i32
    %c0_i32_0 = arith.constant 0 : i32
    %c0_i32_1 = arith.constant 0 : i32
    return %arg0, %c0_i32, %c0_i32_0 : i32, i32, i32
  }
  func.func @transform_1(%arg0: i32) -> (i32, i32) {
    %c0_i32 = arith.constant 0 : i32
    %c0_i32_0 = arith.constant 0 : i32
    %c0_i32_1 = arith.constant 0 : i32
    return %c0_i32, %c0_i32_0 : i32, i32
  }
  func.func @transform_2(%arg0: i32) -> (i32, i32) {
    %c0_i32 = arith.constant 0 : i32
    %c0_i32_0 = arith.constant 0 : i32
    %c0_i32_1 = arith.constant 0 : i32
    return %c0_i32, %c0_i32_0 : i32, i32
  }
  func.func @transform_3(%arg0: i32) -> (i32, i32, i32) {
    %c0_i32 = arith.constant 0 : i32
    %c0_i32_0 = arith.constant 0 : i32
    %c0_i32_1 = arith.constant 0 : i32
    return %arg0, %c0_i32, %c0_i32_0 : i32, i32, i32
  }
}

</mosaic_0001>

<llo_original>
// kernel: tpu_custom_call.1
$region0: #{tpu_custom_call.1}
  #allocation0 [shape = 'u32[]', space=smem, size = 0x4, offset = 0x4, fixed_abs, tag = 'smem constant byte address 0x4 - core index']
  #allocation1 [shape = 'u32[72,128]{1,0:T(1,128)}', space=vmem, size = 0x9000, scoped, tag = 'internal scratch']
  %s0 = inlined_call_operand.hbm [shape: f32[2,8,256], index: 0, kind: input, shape index: {}]
  %s1 = inlined_call_operand.hbm [shape: f32[8,8], index: 1, kind: input, shape index: {}]
  %s2 = inlined_call_operand.vmem [shape: f32[1,8], index: 2, kind: input, shape index: {}]
  %s3 = inlined_call_operand.hbm [shape: f32[2,8,256], index: 3, kind: output, shape index: {}]
  %s4 = sld [smem:[#allocation0]]
  $region53: #{tpu_custom_call.1} parent=0
    _
  %s6 = ssub.s32 1, %s4
  %s7 = scalar_select 0, %s6, %s4
  $region1: #{tpu_custom_call.1} parent=0
    #allocation2 [shape = 'u8[16384]{0}', space=vmem, size = 0x4000, scoped, tag = 'input window, operand 0']
    #allocation3 [shape = 's32[2]{0}', space=sflag, size = 0x8, scoped, tag = 'scoped memory for tpu_custom_call.1']
    #allocation4 [shape = 's32[2]{0}', space=sflag, size = 0x8, scoped, tag = 'scoped memory for tpu_custom_call.1']
    #allocation5 [shape = 'u8[4096]{0}', space=vmem, size = 0x1000, scoped, tag = 'input window, operand 1, single buffered']
    #allocation6 [shape = 's32[1]{0}', space=sflag, size = 0x4, scoped, tag = 'scoped memory for tpu_custom_call.1']
    #allocation7 [shape = 'u8[16384]{0}', space=vmem, size = 0x4000, scoped, tag = 'output window, operand 0']
    %8 = vsyncpa [#allocation3], 0
    %s9 = scalar_lea.sflag [#allocation3], 1
    %10 = vsyncpa %s9, 0
    %11 = vsyncpa [#allocation6], 0
    %12 = vsyncpa [#allocation4], 0
    %s13 = scalar_lea.sflag [#allocation4], 1
    %14 = vsyncpa %s13, 0
    loop: start=0, step=1, limit=4
    $region2: #{tpu_custom_call.1} parent=1 // loop_pre_header
      _
    $region3: #{tpu_custom_call.1} parent=1 // loop_header
      %s16 = sphi 0, %s20
      %p17 = scmp.ge.s32.totalorder %s16, 4
      %s26 = sphi 0, %s28
      %s29 = sphi 0, %s26
      %s30 = sphi 0, %s29
      %s46 = sphi 0, %s30
      %s50 = sphi 0, %s50
      %s52 = sphi 0, %s50
      %s53 = sphi 0, %s52
      %s67 = sphi 0, %s53
      %s71 = sphi 0, %s71
      %s73 = sphi 0, %s71
      %s74 = sphi 0, %s73
      %s88 = sphi 0, %s74
      %s94 = sphi 0, %s96
      %s97 = sphi 0, %s94
      %s98 = sphi 0, %s97
      %s114 = sphi 0, %s98
    $region4: #{tpu_custom_call.1} parent=1 // loop_header_branch
      %19 = sbr.rel (%p17) target = $region8
    $region5: #{tpu_custom_call.1} parent=1 // loop_body
      %s21 = ssub.s32 %s16, 1
      %s22 = ssub.s32 %s16, 2
      %s23 = sadd.s32 %s16, 1
      %s24 = ssub.s32 %s16, %s23
      %p25 = scmp.eq.s32.totalorder %s24, 0
      %s27 = sadd.s32 %s26, 1
      %s28 = scalar_select %p25, %s26, %s27
      %p31 = pneg %p25
      %p32 = scmp.eq.s32.totalorder %s16, 1
      %p33 = por %p31, %p32
      %p34 = scmp.ne.s32.totalorder %s26, %s29
      %p35 = scmp.eq.s32.totalorder %s16, 0
      %p36 = por %p34, %p35
      %p37 = scmp.ne.s32.totalorder %s26, %s29
      %p38 = scmp.eq.s32.totalorder %s21, 1
      %p39 = por %p37, %p38
      %p40 = scmp.ne.s32.totalorder %s29, %s30
      %p41 = scmp.eq.s32.totalorder %s21, 0
      %p42 = por %p40, %p41
      %p43 = scmp.ne.s32.totalorder %s29, %s30
      %p44 = scmp.eq.s32.totalorder %s22, 1
      %p45 = por %p43, %p44
      %p47 = scmp.ne.s32.totalorder %s30, %s46
      %p48 = scmp.eq.s32.totalorder %s22, 0
      %p49 = por %p47, %p48
      %s51 = sadd.s32 %s50, 1
      %p54 = scmp.eq.s32.totalorder %s16, 1
      %p55 = scmp.ne.s32.totalorder %s50, %s52
      %p56 = scmp.eq.s32.totalorder %s16, 0
      %p57 = por %p55, %p56
      %p58 = scmp.ne.s32.totalorder %s50, %s52
      %p59 = scmp.eq.s32.totalorder %s21, 1
      %p60 = por %p58, %p59
      %p61 = scmp.ne.s32.totalorder %s52, %s53
      %p62 = scmp.eq.s32.totalorder %s21, 0
      %p63 = por %p61, %p62
      %p64 = scmp.ne.s32.totalorder %s52, %s53
      %p65 = scmp.eq.s32.totalorder %s22, 1
      %p66 = por %p64, %p65
      %p68 = scmp.ne.s32.totalorder %s53, %s67
      %p69 = scmp.eq.s32.totalorder %s22, 0
      %p70 = por %p68, %p69
      %s72 = sadd.s32 %s71, 1
      %p75 = scmp.eq.s32.totalorder %s16, 1
      %p76 = scmp.ne.s32.totalorder %s71, %s73
      %p77 = scmp.eq.s32.totalorder %s16, 0
      %p78 = por %p76, %p77
      %p79 = scmp.ne.s32.totalorder %s71, %s73
      %p80 = scmp.eq.s32.totalorder %s21, 1
      %p81 = por %p79, %p80
      %p82 = scmp.ne.s32.totalorder %s73, %s74
      %p83 = scmp.eq.s32.totalorder %s21, 0
      %p84 = por %p82, %p83
      %p85 = scmp.ne.s32.totalorder %s73, %s74
      %p86 = scmp.eq.s32.totalorder %s22, 1
      %p87 = por %p85, %p86
      %p89 = scmp.ne.s32.totalorder %s74, %s88
      %p90 = scmp.eq.s32.totalorder %s22, 0
      %p91 = por %p89, %p90
      %s92 = ssub.s32 %s16, %s23
      %p93 = scmp.eq.s32.totalorder %s92, 0
      %s95 = sadd.s32 %s94, 1
      %s96 = scalar_select %p93, %s94, %s95
      %p99 = pneg %p93
      %p100 = scmp.eq.s32.totalorder %s16, 1
      %p101 = por %p99, %p100
      %p102 = scmp.ne.s32.totalorder %s94, %s97
      %p103 = scmp.eq.s32.totalorder %s16, 0
      %p104 = por %p102, %p103
      %p105 = scmp.ne.s32.totalorder %s94, %s97
      %p106 = scmp.eq.s32.totalorder %s21, 1
      %p107 = por %p105, %p106
      %p108 = scmp.ne.s32.totalorder %s97, %s98
      %p109 = scmp.eq.s32.totalorder %s21, 0
      %p110 = por %p108, %p109
      %p111 = scmp.ne.s32.totalorder %s97, %s98
      %p112 = scmp.eq.s32.totalorder %s22, 1
      %p113 = por %p111, %p112
      %p115 = scmp.ne.s32.totalorder %s98, %s114
      %p116 = scmp.eq.s32.totalorder %s22, 0
      %p117 = por %p115, %p116
      %p118 = scmp.le.s32.totalorder 1, %s16
      %p119 = scmp.lt.s32.totalorder %s16, 3
      %p120 = pnand %p118, %p119
      %p121 = pneg %p120
      // Predicated region
      $region9: #{tpu_custom_call.1} parent=5 // pred_check
        _
      $region10: #{tpu_custom_call.1} parent=5 // pred_check_branch
        %123 = sbr.rel (%p120) target = $region12
      $region11: #{tpu_custom_call.1} parent=5 // pred_region
        %s124 = ssub.s32 %s16, 1
        // Predicated region
        $region13: #{tpu_custom_call.1} parent=11 // pred_check
          %p125 = pneg %p63
        $region14: #{tpu_custom_call.1} parent=11 // pred_check_branch
          %127 = sbr.rel (%p125) target = $region16
        $region15: #{tpu_custom_call.1} parent=11 // pred_region
          %129 = vsyncadd [#allocation6], 0
          %s131 = sshll.u32 %s1, 4
          %s132 = int_to_ptr.hbm [resolvable:$true] %s131
          %s133 = sshll.u32 [#allocation5], 4
          %s134 = int_to_ptr.vmem [resolvable:$true] %s133
          %136 = dma.hbm_to_vmem [thread:$0]  %s132, 128, %s134, [#allocation6]
        $region16: #{tpu_custom_call.1} parent=11 // pred_fallthru
          _
        // Predicated region
        $region17: #{tpu_custom_call.1} parent=11 // pred_check
          %p137 = pneg %p84
        $region18: #{tpu_custom_call.1} parent=11 // pred_check_branch
          %139 = sbr.rel (%p137) target = $region20
        $region19: #{tpu_custom_call.1} parent=11 // pred_region
          _
        $region20: #{tpu_custom_call.1} parent=11 // pred_fallthru
          _
      $region12: #{tpu_custom_call.1} parent=5 // pred_fallthru
        _
      %p140 = scmp.lt.s32.totalorder %s16, 2
      // Predicated region
      $region21: #{tpu_custom_call.1} parent=5 // pred_check
        %p141 = pneg %p140
      $region22: #{tpu_custom_call.1} parent=5 // pred_check_branch
        %143 = sbr.rel (%p141) target = $region24
      $region23: #{tpu_custom_call.1} parent=5 // pred_region
        // Predicated region
        $region25: #{tpu_custom_call.1} parent=23 // pred_check
          %p144 = pneg %p36
        $region26: #{tpu_custom_call.1} parent=23 // pred_check_branch
          %146 = sbr.rel (%p144) target = $region28
        $region27: #{tpu_custom_call.1} parent=23 // pred_region
          %s147 = sand.u32 %s26, 1
          %s148 = scalar_lea.sflag [#allocation3], %s147
          %s149 = sand.u32 %s26, 1
          %s150 = smul.addr %s149, 16
          %s151 = scalar_lea.vmem [#allocation2], %s150
          %153 = vsyncadd %s148, 0
          %s154 = smul.addr %s16, 2
          %s155 = smul.addr %s154, 8
          %s156 = scalar_lea.hbm %s0, %s155
          %s158 = sshll.u32 %s156, 4
          %s159 = int_to_ptr.hbm [resolvable:$true] %s158
          %s160 = sshll.u32 %s151, 4
          %s161 = int_to_ptr.vmem [resolvable:$true] %s160
          %163 = dma.hbm_to_vmem [thread:$0]  %s159, 256, %s161, %s148
        $region28: #{tpu_custom_call.1} parent=23 // pred_fallthru
          _
      $region24: #{tpu_custom_call.1} parent=5 // pred_fallthru
        _
      %p164 = scmp.le.s32.totalorder 1, %s16
      %p165 = scmp.lt.s32.totalorder %s16, 3
      %p166 = pnand %p164, %p165
      %p167 = pneg %p166
      // Predicated region
      $region29: #{tpu_custom_call.1} parent=5 // pred_check
        _
      $region30: #{tpu_custom_call.1} parent=5 // pred_check_branch
        %169 = sbr.rel (%p166) target = $region32
      $region31: #{tpu_custom_call.1} parent=5 // pred_region
        %s170 = ssub.s32 %s16, 1
        %s171 = sand.u32 %s29, 1
        %s172 = scalar_lea.sflag [#allocation3], %s171
        %s173 = sand.u32 %s29, 1
        %s174 = smul.addr %s173, 16
        %s175 = scalar_lea.vmem [#allocation2], %s174
        // Predicated region
        $region33: #{tpu_custom_call.1} parent=31 // pred_check
          %p176 = pneg %p42
        $region34: #{tpu_custom_call.1} parent=31 // pred_check_branch
          %178 = sbr.rel (%p176) target = $region36
        $region35: #{tpu_custom_call.1} parent=31 // pred_region
          %180 = dma.done %s172, 256
        $region36: #{tpu_custom_call.1} parent=31 // pred_fallthru
          _
        // Predicated region
        $region37: #{tpu_custom_call.1} parent=31 // pred_check
          %p181 = pneg %p63
        $region38: #{tpu_custom_call.1} parent=31 // pred_check_branch
          %183 = sbr.rel (%p181) target = $region40
        $region39: #{tpu_custom_call.1} parent=31 // pred_region
          %185 = dma.done [#allocation6], 128
        $region40: #{tpu_custom_call.1} parent=31 // pred_fallthru
          _
        %s186 = sand.u32 %s29, 1
        %s187 = scalar_lea.sflag [#allocation3], %s186
        %s188 = sand.u32 %s29, 1
        %s189 = smul.addr %s188, 16
        %s190 = scalar_lea.vmem [#allocation2], %s189
        %p191 = pneg %p42
        %p192 = pneg %p39
        %p193 = pneg %p63
        %p194 = pneg %p60
        %p195 = pneg %p84
        %p196 = pneg %p81
        %p197 = pneg %p110
        %p198 = pneg %p107
        %s199 = sand.u32 %s97, 1
        %s200 = scalar_lea.sflag [#allocation4], %s199
        %s201 = sand.u32 %s97, 1
        %s202 = smul.addr %s201, 16
        %s203 = scalar_lea.vmem [#allocation7], %s202
        %v204 = vld [vmem:[%s175] sm:$0xff]
        %v205 = vld [vmem:[%s175 + $0x8] sm:$0xff]
        %v206 = vadd.f32 %v204, %v205
        %207 = vadd.xlane.f32.xlu0 %v206
        %v208 = vpop.xlane.xlu0 %207
        %v209 = vmul.f32 %v208, 0.00390625
        %v210 = vld [vmem:[#allocation5] sm:$0xff]
        %v212 = vlaneseq
        %v213 = vand.u32 %v212, 127
        %v214 = vperm.slane %v209, %v213
        %vm215 = vcmask 1042434
        %v216 = vsel %vm215, %v214, %v214
        %vm217 = vcmask 1043459
        %v218 = vsel %vm217, %v214, %v216
        %vm219 = vcmask 1044484
        %v220 = vsel %vm219, %v214, %v218
        %vm221 = vcmask 1045509
        %v222 = vsel %vm221, %v214, %v220
        %vm223 = vcmask 1046534
        %v224 = vsel %vm223, %v214, %v222
        %vm225 = vcmask 1047559
        %v226 = vsel %vm225, %v214, %v224
        %v228 = vmul.f32 %v210, %v226
        %vm229 = vcmask 64512
        %v230 = vsel %vm229, %v228, 0.0
        %231 = vadd.xlane.f32.xlu0 %v230
        %v232 = vpop.xlane.xlu0 %231
        %v233 = vld [vmem:[%s2] sm:$0x1]
        %v235 = vperm.slane %v233, 0
        %v236 = vlaneseq
        %v237 = vshrl.u32 %v236, 7
        %239 = vset.pattern.permute.xlu0 %v237
        %240 = vperm.xlu0 %239, %v235
        %v241 = vpop.permute.xlu0 %240
        %v243 = vadd.f32 %v232, %v241
        %v244 = vxor.u32 %v243, 2147483648
        %v245 = vmul.f32 %v244, 1.442695
        %v246 = vpow.pop %v245
        %v247 = vadd.f32 %v246, 1.0
        %v248 = vrcp.pop %v247
        %v249 = vmul.f32 %v247, %v248
        %v250 = vsub.f32 1.0, %v249
        %v251 = vmul.f32 %v248, %v250
        %v252 = vadd.f32 %v248, %v251
        %vm253 = vweird.f32 %v247
        %vm254 = vweird.f32 %v248
        %vm255 = vmor %vm253, %vm254
        %v256 = vsel %vm255, %v248, %v252
        %v257 = vand.u32 2147483647, %v247
        %vm258 = vcmp.eq.f32.partialorder %v257, 8.507059e+37
        %v259 = vand.u32 %v247, 2147483648
        %v260 = vor.u32 1.1754944e-38, %v259
        %v261 = vsel %vm258, %v260, %v256
        %v262 = vmul.f32 1.0, %v261
        %264 = vset.pattern.permute.xlu0 0
        %265 = vperm.xlu0 %264, %v262
        %v266 = vpop.permute.xlu0 %265
        %v268 = vmul.f32 %v204, %v266
        %v269 = vmul.f32 %v205, %v266
        %270 = vst [vmem:[%s203] sm:$0xff] %v268
        %271 = vst [vmem:[%s203 + $0x8] sm:$0xff] %v269
        %s272 = sand.u32 %s97, 1
        %s273 = scalar_lea.sflag [#allocation4], %s272
        %s274 = sand.u32 %s97, 1
        %s275 = smul.addr %s274, 16
        %s276 = scalar_lea.vmem [#allocation7], %s275
        // Predicated region
        $region41: #{tpu_custom_call.1} parent=31 // pred_check
          %p277 = pneg %p107
        $region42: #{tpu_custom_call.1} parent=31 // pred_check_branch
          %279 = sbr.rel (%p277) target = $region44
        $region43: #{tpu_custom_call.1} parent=31 // pred_region
          %281 = vsyncadd %s273, 0
          %s282 = smul.addr %s21, 2
          %s283 = smul.addr %s282, 8
          %s284 = scalar_lea.hbm %s3, %s283
          %s286 = sshll.u32 %s276, 4
          %s287 = int_to_ptr.vmem [resolvable:$true] %s286
          %s288 = sshll.u32 %s284, 4
          %s289 = int_to_ptr.hbm [resolvable:$true] %s288
          %291 = dma.vmem_to_hbm [thread:$0]  %s287, 256, %s289, %s273
        $region44: #{tpu_custom_call.1} parent=31 // pred_fallthru
          _
      $region32: #{tpu_custom_call.1} parent=5 // pred_fallthru
        _
      %p292 = scmp.le.s32.totalorder 2, %s16
      // Predicated region
      $region45: #{tpu_custom_call.1} parent=5 // pred_check
        %p293 = pneg %p292
      $region46: #{tpu_custom_call.1} parent=5 // pred_check_branch
        %295 = sbr.rel (%p293) target = $region48
      $region47: #{tpu_custom_call.1} parent=5 // pred_region
        %s296 = ssub.s32 %s16, 2
        // Predicated region
        $region49: #{tpu_custom_call.1} parent=47 // pred_check
          %p297 = pneg %p113
        $region50: #{tpu_custom_call.1} parent=47 // pred_check_branch
          %299 = sbr.rel (%p297) target = $region52
        $region51: #{tpu_custom_call.1} parent=47 // pred_region
          %s300 = sand.u32 %s98, 1
          %s301 = scalar_lea.sflag [#allocation4], %s300
          %s302 = sand.u32 %s98, 1
          %s303 = smul.addr %s302, 16
          %s304 = scalar_lea.vmem [#allocation7], %s303
          %306 = dma.done %s301, 256
        $region52: #{tpu_custom_call.1} parent=47 // pred_fallthru
          _
      $region48: #{tpu_custom_call.1} parent=5 // pred_fallthru
        _
    $region6: #{tpu_custom_call.1} parent=1 // loop_footer
      %s20 = sadd.s32 1, %s16
    $region7: #{tpu_custom_call.1} parent=1 // loop_footer_branch
      %15 = sbr.rel target = $region3
    $region8: #{tpu_custom_call.1} parent=1 // loop_exit
      _
    %307 = vsyncpa [#allocation3], 1
    %s308 = scalar_lea.sflag [#allocation3], 1
    %309 = vsyncpa %s308, 1
    %310 = vsyncpa [#allocation6], 1
    %311 = vsyncpa [#allocation4], 1
    %s312 = scalar_lea.sflag [#allocation4], 1
    %313 = vsyncpa %s312, 1

</llo_original>
